<compile_context>
chip_gen: v7x
topology: tpu7x:2x2x1
jax: 0.10.0
libtpu: 0.0.40
codegen_flags: <defaults>
</compile_context>

<pallas_src>
import functools

import jax
import jax.numpy as jnp
from jax.experimental import pallas as pl
from jax.experimental.pallas import tpu as pltpu


def _round_up(x, m):
    return (x + m - 1) // m * m


# ----------------------------------------------------------------------------
# Host-side parameter packing (static layout, traced values)
# ----------------------------------------------------------------------------
def _pack_branch_slab(params_u, params_g):
    """Block-diagonal [W_u 0; 0 W_g] + bias row per layer, stacked along rows."""
    assert len(params_u) == len(params_g), "branch fusion assumes equal depth"
    width = max(wu.shape[1] + wg.shape[1]
                for (wu, _), (wg, _) in zip(params_u, params_g))
    blocks, layout, row = [], [], 0
    for (wu, bu), (wg, bg) in zip(params_u, params_g):
        din_u, dout_u = wu.shape
        din_g, dout_g = wg.shape
        din, dout = din_u + din_g, dout_u + dout_g
        rows = _round_up(din + 1, 8)
        blk = jnp.zeros((rows, width), jnp.float32)
        blk = blk.at[:din_u, :dout_u].set(wu)
        blk = blk.at[din_u:din, dout_u:dout].set(wg)
        blk = blk.at[din, :dout_u].set(bu)
        blk = blk.at[din, dout_u:dout].set(bg)
        blocks.append(blk)
        layout.append((row, din, dout))
        row += rows
    return jnp.concatenate(blocks, axis=0).astype(jnp.bfloat16), tuple(layout)


def _pack_trunk_slab(params_t):
    """Per layer: [dout, din] = W^T in cols [0,din), bias in col din."""
    width = max(w.shape[0] for w, _ in params_t) + 1
    blocks, layout, row = [], [], 0
    for w, b in params_t:
        din, dout = w.shape
        rows = _round_up(dout, 8)
        blk = jnp.zeros((rows, width), jnp.float32)
        blk = blk.at[:dout, :din].set(w.T)
        blk = blk.at[:dout, din].set(b)
        blocks.append(blk)
        layout.append((row, din, dout))
        row += rows
    return jnp.concatenate(blocks, axis=0).astype(jnp.bfloat16), tuple(layout)


# ----------------------------------------------------------------------------
# Fused Pallas kernel (layers unrolled at trace time via static layouts)
# ----------------------------------------------------------------------------
def _make_kernel(branch_layout, trunk_layout, h_u, trunk_outer_first):
    def kernel(fb_ref, xt_ref, bslab_ref, tslab_ref, o_ref):
        bf16, f32 = jnp.bfloat16, jnp.float32

        # ---- fused (block-diagonal) branch MLPs: activations [M_pad, d] ----
        y = fb_ref[...]                                           # f32
        for (r0, din, dout) in branch_layout:
            w = bslab_ref[r0:r0 + din, :dout]                     # bf16 [din,dout]
            b = bslab_ref[r0 + din:r0 + din + 1, :dout]           # bf16 [1,dout]
            y = jnp.tanh(
                jnp.dot(y.astype(bf16), w, preferred_element_type=f32)
                + b.astype(f32))

        # ---- trunk MLP, transposed: activations [h, N_pad] ----
        z = xt_ref[...]                                           # f32 [d_x, N_pad]
        for li, (r0, din, dout) in enumerate(trunk_layout):
            wt = tslab_ref[r0:r0 + dout, :din]                    # bf16 [dout,din]
            b = tslab_ref[r0:r0 + dout, din:din + 1]              # bf16 [dout,1]
            if li == 0 and trunk_outer_first:
                # Tiny K: outer-product form on the VPU (MXU would be ~all pad).
                wt_f = wt.astype(f32)
                acc = b.astype(f32)
                for j in range(din):
                    acc = acc + wt_f[:, j:j + 1] * z[j:j + 1, :]
                z = jnp.tanh(acc)
            else:
                z = jnp.tanh(
                    jnp.dot(wt, z.astype(bf16), preferred_element_type=f32)
                    + b.astype(f32))

        # ---- y_out[i,k] = sum_j (y_u*y_g)[i,j] * y_tr[k,j] == prod @ z ----
        prod = y[:, :h_u] * y[:, h_u:]                            # f32 [M_pad, H]
        o_ref[...] = jnp.dot(prod.astype(bf16), z.astype(bf16),
                             preferred_element_type=f32)

    return kernel


def _cost_estimate(m, n, branch_layout, trunk_layout, h, bytes_accessed):
    flops, trans = 0, 0
    for _, din, dout in branch_layout:
        flops += 2 * m * din * dout + m * dout
        trans += m * dout
    for _, din, dout in trunk_layout:
        flops += 2 * n * din * dout + n * dout
        trans += n * dout
    flops += m * h + 2 * m * h * n
    return pl.CostEstimate(flops=flops, transcendentals=trans,
                           bytes_accessed=bytes_accessed)


# ----------------------------------------------------------------------------
# Wrapper
# ----------------------------------------------------------------------------
@functools.partial(jax.jit, static_argnames=("num_snap", "num_pts"))
def opnn_forward(f_u, f_g, x, params_u, params_g, params_t, *, num_snap, num_pts):
    M = f_u.shape[0]
    N = x.shape[0]
    assert N == num_snap * num_pts, "x must have num_snap*num_pts rows"
    h_u = params_u[-1][0].shape[1]
    h_g = params_g[-1][0].shape[1]
    h_t = params_t[-1][0].shape[1]
    assert h_u == h_g == h_t, "branch/trunk output widths must match"

    M_pad = _round_up(M, 8)        # sublane-dense rows
    N_pad = _round_up(N, 128)      # lane-dense output columns

    # Concatenate branch features along lanes; pre-transpose the trunk input.
    fb = jnp.concatenate([f_u, f_g], axis=1).astype(jnp.float32)
    fb = jnp.pad(fb, ((0, M_pad - M), (0, 0)))
    xt = jnp.pad(x.astype(jnp.float32).T, ((0, 0), (0, N_pad - N)))

    bslab, branch_layout = _pack_branch_slab(params_u, params_g)
    tslab, trunk_layout = _pack_trunk_slab(params_t)
    trunk_outer_first = params_t[0][0].shape[0] <= 8

    kernel = _make_kernel(branch_layout, trunk_layout, h_u, trunk_outer_first)

    bytes_accessed = (4 * (fb.size + xt.size + M_pad * N_pad)
                      + 2 * (bslab.size + tslab.size))
    vmem = pl.BlockSpec(memory_space=pltpu.MemorySpace.VMEM)
    out = pl.pallas_call(
        kernel,
        out_shape=jax.ShapeDtypeStruct((M_pad, N_pad), jnp.float32),
        in_specs=[vmem, vmem, vmem, vmem],
        out_specs=vmem,
        cost_estimate=_cost_estimate(M_pad, N_pad, branch_layout, trunk_layout,
                                     h_u, bytes_accessed),
    )(fb, xt, bslab, tslab)

    return out[:M, :N].reshape(-1, num_snap, num_pts)


# ----------------------------------------------------------------------------
# Parameter construction (deterministic, synthetic)
# ----------------------------------------------------------------------------
def make_mlp_params(key, dims):
    params = []
    for i in range(len(dims) - 1):
        key, kw, kb = jax.random.split(key, 3)
        w = jax.random.normal(kw, (dims[i], dims[i + 1]), jnp.float32) / jnp.sqrt(
            jnp.float32(dims[i]))
        b = 0.01 * jax.random.normal(kb, (dims[i + 1],), jnp.float32)
        params.append((w, b))
    return params, key


# ----------------------------------------------------------------------------
# Pure-JAX references
# ----------------------------------------------------------------------------
def _ref_mlp_f32(a, params):
    for w, b in params:
        a = jnp.tanh(a @ w + b)
    return a


def ref_forward_f32(f_u, f_g, x, params_u, params_g, params_t, num_snap, num_pts):
    y = _ref_mlp_f32(f_u, params_u) * _ref_mlp_f32(f_g, params_g)
    y_t = _ref_mlp_f32(x, params_t)
    return (y @ y_t.T).reshape(-1, num_snap, num_pts)


def ref_forward_bf16(f_u, f_g, x, params_u, params_g, params_t, num_snap, num_pts):
    """Mirrors the kernel's quantization: bf16 matmul operands, f32 accumulation."""
    bf, f32 = jnp.bfloat16, jnp.float32

    def mlp(a, params):
        for w, b in params:
            a = jnp.tanh(jnp.dot(a.astype(bf), w.astype(bf),
                                 preferred_element_type=f32)
                         + b.astype(bf).astype(f32))
        return a

    yu = mlp(f_u, params_u)
    yg = mlp(f_g, params_g)
    z = x.astype(f32).T
    for i, (w, b) in enumerate(params_t):
        wt = w.T.astype(bf)
        bb = b.astype(bf).astype(f32)[:, None]
        if i == 0 and w.shape[0] <= 8:
            wt_f = wt.astype(f32)
            acc = bb
            for j in range(w.shape[0]):
                acc = acc + wt_f[:, j:j + 1] * z[j:j + 1, :]
            z = jnp.tanh(acc)
        else:
            z = jnp.tanh(jnp.dot(wt, z.astype(bf), preferred_element_type=f32) + bb)
    out = jnp.dot((yu * yg).astype(bf), z.astype(bf), preferred_element_type=f32)
    return out.reshape(-1, num_snap, num_pts)


if __name__ == "__main__":
    # Small, DeepONet-consistent shapes.
    branch_u_dim = [8, 32, 32]
    branch_g_dim = [8, 32, 32]
    trunk_dim = [2, 32, 32]
    num_snap, num_pts = 8, 16
    M = 4
    N = num_snap * num_pts  # 128 trunk points -> lane-dense output

    key = jax.random.PRNGKey(0)
    params_u, key = make_mlp_params(key, branch_u_dim)
    params_g, key = make_mlp_params(key, branch_g_dim)
    params_t, key = make_mlp_params(key, trunk_dim)

    key, ku, kg, kx = jax.random.split(key, 4)
    f_u = jax.random.normal(ku, (M, branch_u_dim[0]), jnp.float32)
    f_g = jax.random.normal(kg, (M, branch_g_dim[0]), jnp.float32)
    x = jax.random.normal(kx, (N, trunk_dim[0]), jnp.float32)

    out = opnn_forward(f_u, f_g, x,
                       tuple(params_u), tuple(params_g), tuple(params_t),
                       num_snap=num_snap, num_pts=num_pts)
    out = jax.block_until_ready(out)
    assert out.shape == (M, num_snap, num_pts), out.shape

    # Tight check vs a JAX reference using the same bf16 operand quantization.
    ref_q = ref_forward_bf16(f_u, f_g, x, params_u, params_g, params_t,
                             num_snap, num_pts)
    assert jnp.allclose(out, ref_q, atol=5e-3, rtol=5e-3), "mismatch vs bf16 ref"

    # Loose sanity check vs the full-f32 reference (drift from bf16 matmuls only).
    ref_f = ref_forward_f32(f_u, f_g, x, params_u, params_g, params_t,
                            num_snap, num_pts)
    rel = jnp.linalg.norm(out - ref_f) / jnp.linalg.norm(ref_f)
    assert rel < 0.05, f"relative error vs f32 ref too large: {rel}"

    print("KERNEL_OK")
</pallas_src>

<mosaic_0001>
module attributes {stable_mosaic.version = 11 : i64} {
  func.func @kernel(%arg0: memref<8x16xf32, #tpu.memory_space<vmem>>, %arg1: memref<2x128xf32, #tpu.memory_space<vmem>>, %arg2: memref<96x64xbf16, #tpu.memory_space<vmem>>, %arg3: memref<64x33xbf16, #tpu.memory_space<vmem>>, %arg4: memref<8x128xf32, #tpu.memory_space<vmem>>) attributes {dimension_semantics = [], scalar_prefetch = 0 : i64, scratch_operands = 0 : i64, tpu.core_type = #tpu.core_type<tc>} {
    %c0 = arith.constant 0 : index
    %c0_0 = arith.constant 0 : index
    %0 = vector.load %arg0[%c0, %c0_0] : memref<8x16xf32, #tpu.memory_space<vmem>>, vector<8x16xf32>
    %c0_1 = arith.constant 0 : index
    %c0_2 = arith.constant 0 : index
    %1 = vector.load %arg2[%c0_1, %c0_2] : memref<96x64xbf16, #tpu.memory_space<vmem>>, vector<16x64xbf16>
    %c16 = arith.constant 16 : index
    %c0_3 = arith.constant 0 : index
    %2 = vector.load %arg2[%c16, %c0_3] : memref<96x64xbf16, #tpu.memory_space<vmem>>, vector<1x64xbf16>
    %3 = arith.truncf %0 : vector<8x16xf32> to vector<8x16xbf16>
    %cst = arith.constant dense<0.000000e+00> : vector<8x64xf32>
    %4 = tpu.matmul %3, %1, %cst {dimension_numbers = #tpu.dot_dimension_numbers<[1], [0], [0], [1], [0, 0, 1, 1], [], []>} : vector<8x16xbf16>, vector<16x64xbf16>, vector<8x64xf32> -> vector<8x64xf32>
    %5 = arith.extf %2 : vector<1x64xbf16> to vector<1x64xf32>
    %6 = vector.broadcast %5 : vector<1x64xf32> to vector<8x64xf32>
    %7 = arith.addf %4, %6 : vector<8x64xf32>
    %8 = math.tanh %7 : vector<8x64xf32>
    %c24 = arith.constant 24 : index
    %c0_4 = arith.constant 0 : index
    %9 = vector.load %arg2[%c24, %c0_4] : memref<96x64xbf16, #tpu.memory_space<vmem>>, vector<64x64xbf16>
    %c88 = arith.constant 88 : index
    %c0_5 = arith.constant 0 : index
    %10 = vector.load %arg2[%c88, %c0_5] : memref<96x64xbf16, #tpu.memory_space<vmem>>, vector<1x64xbf16>
    %11 = arith.truncf %8 : vector<8x64xf32> to vector<8x64xbf16>
    %cst_6 = arith.constant dense<0.000000e+00> : vector<8x64xf32>
    %12 = tpu.matmul %11, %9, %cst_6 {dimension_numbers = #tpu.dot_dimension_numbers<[1], [0], [0], [1], [0, 0, 1, 1], [], []>} : vector<8x64xbf16>, vector<64x64xbf16>, vector<8x64xf32> -> vector<8x64xf32>
    %13 = arith.extf %10 : vector<1x64xbf16> to vector<1x64xf32>
    %14 = vector.broadcast %13 : vector<1x64xf32> to vector<8x64xf32>
    %15 = arith.addf %12, %14 : vector<8x64xf32>
    %16 = math.tanh %15 : vector<8x64xf32>
    %c0_7 = arith.constant 0 : index
    %c0_8 = arith.constant 0 : index
    %17 = vector.load %arg1[%c0_7, %c0_8] : memref<2x128xf32, #tpu.memory_space<vmem>>, vector<2x128xf32>
    %c0_9 = arith.constant 0 : index
    %c0_10 = arith.constant 0 : index
    %18 = vector.load %arg3[%c0_9, %c0_10] : memref<64x33xbf16, #tpu.memory_space<vmem>>, vector<32x2xbf16>
    %c0_11 = arith.constant 0 : index
    %c2 = arith.constant 2 : index
    %19 = vector.load %arg3[%c0_11, %c2] : memref<64x33xbf16, #tpu.memory_space<vmem>>, vector<32x1xbf16>
    %20 = arith.extf %18 : vector<32x2xbf16> to vector<32x2xf32>
    %21 = arith.extf %19 : vector<32x1xbf16> to vector<32x1xf32>
    %22 = vector.extract_strided_slice %20 {offsets = [0, 0], sizes = [32, 1], strides = [1, 1]} : vector<32x2xf32> to vector<32x1xf32>
    %23 = vector.extract_strided_slice %17 {offsets = [0, 0], sizes = [1, 128], strides = [1, 1]} : vector<2x128xf32> to vector<1x128xf32>
    %24 = vector.broadcast %22 : vector<32x1xf32> to vector<32x128xf32>
    %25 = vector.broadcast %23 : vector<1x128xf32> to vector<32x128xf32>
    %26 = arith.mulf %24, %25 : vector<32x128xf32>
    %27 = vector.broadcast %21 : vector<32x1xf32> to vector<32x128xf32>
    %28 = arith.addf %27, %26 : vector<32x128xf32>
    %29 = vector.extract_strided_slice %20 {offsets = [0, 1], sizes = [32, 1], strides = [1, 1]} : vector<32x2xf32> to vector<32x1xf32>
    %30 = vector.extract_strided_slice %17 {offsets = [1, 0], sizes = [1, 128], strides = [1, 1]} : vector<2x128xf32> to vector<1x128xf32>
    %31 = vector.broadcast %29 : vector<32x1xf32> to vector<32x128xf32>
    %32 = vector.broadcast %30 : vector<1x128xf32> to vector<32x128xf32>
    %33 = arith.mulf %31, %32 : vector<32x128xf32>
    %34 = arith.addf %28, %33 : vector<32x128xf32>
    %35 = math.tanh %34 : vector<32x128xf32>
    %c32 = arith.constant 32 : index
    %c0_12 = arith.constant 0 : index
    %36 = vector.load %arg3[%c32, %c0_12] : memref<64x33xbf16, #tpu.memory_space<vmem>>, vector<32x32xbf16>
    %c32_13 = arith.constant 32 : index
    %c32_14 = arith.constant 32 : index
    %37 = vector.load %arg3[%c32_13, %c32_14] : memref<64x33xbf16, #tpu.memory_space<vmem>>, vector<32x1xbf16>
    %38 = arith.truncf %35 : vector<32x128xf32> to vector<32x128xbf16>
    %cst_15 = arith.constant dense<0.000000e+00> : vector<32x128xf32>
    %39 = tpu.matmul %36, %38, %cst_15 {dimension_numbers = #tpu.dot_dimension_numbers<[1], [0], [0], [1], [0, 0, 1, 1], [], []>} : vector<32x32xbf16>, vector<32x128xbf16>, vector<32x128xf32> -> vector<32x128xf32>
    %40 = arith.extf %37 : vector<32x1xbf16> to vector<32x1xf32>
    %41 = vector.broadcast %40 : vector<32x1xf32> to vector<32x128xf32>
    %42 = arith.addf %39, %41 : vector<32x128xf32>
    %43 = math.tanh %42 : vector<32x128xf32>
    %44 = vector.extract_strided_slice %16 {offsets = [0, 0], sizes = [8, 32], strides = [1, 1]} : vector<8x64xf32> to vector<8x32xf32>
    %45 = vector.extract_strided_slice %16 {offsets = [0, 32], sizes = [8, 32], strides = [1, 1]} : vector<8x64xf32> to vector<8x32xf32>
    %46 = arith.mulf %44, %45 : vector<8x32xf32>
    %47 = arith.truncf %46 : vector<8x32xf32> to vector<8x32xbf16>
    %48 = arith.truncf %43 : vector<32x128xf32> to vector<32x128xbf16>
    %cst_16 = arith.constant dense<0.000000e+00> : vector<8x128xf32>
    %49 = tpu.matmul %47, %48, %cst_16 {dimension_numbers = #tpu.dot_dimension_numbers<[1], [0], [0], [1], [0, 0, 1, 1], [], []>} : vector<8x32xbf16>, vector<32x128xbf16>, vector<8x128xf32> -> vector<8x128xf32>
    %c0_17 = arith.constant 0 : index
    %c0_18 = arith.constant 0 : index
    %50 = vector.load %arg4[%c0_17, %c0_18] : memref<8x128xf32, #tpu.memory_space<vmem>>, vector<8x128xf32>
    tpu.vector_store %arg4[%c0_17, %c0_18], %49 {strides = array<i32>} : memref<8x128xf32, #tpu.memory_space<vmem>>, vector<8x128xf32>,
    return
  }
}

</mosaic_0001>

<llo_original>
// kernel: opnn_forward.1
$region0: #{opnn_forward.1}
  #allocation0 [shape = 'u32[]', space=smem, size = 0x4, offset = 0x4, fixed_abs, tag = 'smem constant byte address 0x4 - core index']
  #allocation1 [shape = 'u32[144,128]{1,0:T(1,128)}', space=vmem, size = 0x12000, scoped, tag = 'internal scratch']
  %s0 = inlined_call_operand.vmem [shape: f32[8,16], index: 0, kind: input, shape index: {}]
  %s1 = inlined_call_operand.vmem [shape: f32[2,128], index: 1, kind: input, shape index: {}]
  %s2 = inlined_call_operand.vmem [shape: bf16[96,64], index: 2, kind: input, shape index: {}]
  %s3 = inlined_call_operand.vmem [shape: bf16[64,33], index: 3, kind: input, shape index: {}]
  %s4 = inlined_call_operand.vmem [shape: f32[8,128], index: 4, kind: output, shape index: {}]
  %s5 = sld [smem:[#allocation0]]
  $region26: #{opnn_forward.1} parent=0
    _
  %s7 = ssub.s32 1, %s5
  %s8 = scalar_select 0, %s7, %s5
  // Predicated region
  $region2: #{opnn_forward.1} parent=0 // pred_check
    _
  $region3: #{opnn_forward.1} parent=0 // pred_check_branch
    %10 = sbr.rel (0) target = $region5
  $region4: #{opnn_forward.1} parent=0 // pred_region
    _
  $region5: #{opnn_forward.1} parent=0 // pred_fallthru
    _
  // Predicated region
  $region6: #{opnn_forward.1} parent=0 // pred_check
    _
  $region7: #{opnn_forward.1} parent=0 // pred_check_branch
    %12 = sbr.rel (0) target = $region9
  $region8: #{opnn_forward.1} parent=0 // pred_region
    _
  $region9: #{opnn_forward.1} parent=0 // pred_fallthru
    _
  // Predicated region
  $region10: #{opnn_forward.1} parent=0 // pred_check
    _
  $region11: #{opnn_forward.1} parent=0 // pred_check_branch
    %14 = sbr.rel (0) target = $region13
  $region12: #{opnn_forward.1} parent=0 // pred_region
    _
  $region13: #{opnn_forward.1} parent=0 // pred_fallthru
    _
  // Predicated region
  $region14: #{opnn_forward.1} parent=0 // pred_check
    _
  $region15: #{opnn_forward.1} parent=0 // pred_check_branch
    %16 = sbr.rel (0) target = $region17
  $region16: #{opnn_forward.1} parent=0 // pred_region
    _
  $region17: #{opnn_forward.1} parent=0 // pred_fallthru
    _
  %v18 = vld [vmem:[%s0] sm:$0xff]
  %v19 = vld [vmem:[%s2] sm:$0xf]
  %v20 = vld [vmem:[%s2 + $0x4] sm:$0xf]
  %v21 = vld [vmem:[%s2 + $0x8] sm:$0x1]
  %v22 = vpack.c.bf16 %v18, %v18
  %v23 = vunpack.c.l.bf16 %v21
  %v24 = vlaneseq
  %v25 = vshrl.u32 %v24, 7
  %v26 = vsub.s32 0, %v25
  %v27 = vrot.slane %v23, %v26
  %v30 = vunpack.c.l.b16 %v19
  %v31 = vunpack.c.l.b16 %v20
  %v32 = vpack.c.b16 %v31, %v30
  %vm34 = vcmask 130048
  %v36 = vsel %vm34, %v22, 0
  %38 = vmatprep.subr.bf16.mxu0 0
  %39 = vmatpush1.bf16.msra.mxu0 %v32
  %40 = vmatprep.subr.bf16.mxu0 0
  %41 = vmatpush1.bf16.msra.mxu0 0
  %42 = vmatprep.subr.bf16.mxu0 0
  %43 = vmatpush1.bf16.msra.mxu0 0
  %44 = vmatprep.subr.bf16.mxu0 0
  %45 = vmatpush1.bf16.msra.mxu0 0
  %46 = vmatprep.subr.bf16.mxu0 0
  %47 = vmatpush1.bf16.msra.mxu0 0
  %48 = vmatprep.subr.bf16.mxu0 0
  %49 = vmatpush1.bf16.msra.mxu0 0
  %50 = vmatprep.subr.bf16.mxu0 0
  %51 = vmatpush1.bf16.msra.mxu0 0
  %52 = vmatprep.subr.bf16.mxu0 0
  %53 = vmatpush1.bf16.msra.mxu0 0
  %54 = vmatprep.subr.bf16.mxu0 0
  %55 = vmatpush1.bf16.msra.mxu0 0
  %56 = vmatprep.subr.bf16.mxu0 0
  %57 = vmatpush1.bf16.msra.mxu0 0
  %58 = vmatprep.subr.bf16.mxu0 0
  %59 = vmatpush1.bf16.msra.mxu0 0
  %60 = vmatprep.subr.bf16.mxu0 0
  %61 = vmatpush1.bf16.msra.mxu0 0
  %62 = vmatprep.subr.bf16.mxu0 0
  %63 = vmatpush1.bf16.msra.mxu0 0
  %64 = vmatprep.subr.bf16.mxu0 0
  %65 = vmatpush1.bf16.msra.mxu0 0
  %66 = vmatprep.subr.bf16.mxu0 0
  %67 = vmatpush1.bf16.msra.mxu0 0
  %68 = vmatprep.subr.bf16.mxu0 0
  %69 = vmatpush1.bf16.msra.mxu0 0
  %70 = vmatprep.mubr.bf16.mxu0 0
  %71 = vmatmul.mubr.bf16.gmra.mrb[0].mxu0 %v36
  %v72 = vpop.f32.mrb[0].mxu0
  %v73 = vadd.f32 %v27, %v72
  %v74 = vpop.f32.mrb[0].mxu0
  %v75 = vpop.f32.mrb[0].mxu0
  %v76 = vpop.f32.mrb[0].mxu0
  %77 = vdwg.mxu0
  %v78 = vtanh.pop %v73
  %v79 = vld [vmem:[%s2 + $0xc] sm:$0xf]
  %v80 = vld [vmem:[%s2 + $0x10] sm:$0xf]
  %v81 = vld [vmem:[%s2 + $0x14] sm:$0xf]
  %v82 = vld [vmem:[%s2 + $0x18] sm:$0xf]
  %v83 = vld [vmem:[%s2 + $0x1c] sm:$0xf]
  %v84 = vld [vmem:[%s2 + $0x20] sm:$0xf]
  %v85 = vld [vmem:[%s2 + $0x24] sm:$0xf]
  %v86 = vld [vmem:[%s2 + $0x28] sm:$0xf]
  %v87 = vld [vmem:[%s2 + $0x2c] sm:$0x1]
  %v88 = vpack.c.bf16 %v78, %v78
  %v89 = vunpack.c.l.bf16 %v87
  %v90 = vlaneseq
  %v91 = vshrl.u32 %v90, 7
  %v92 = vsub.s32 0, %v91
  %v93 = vrot.slane %v89, %v92
  %v102 = vunpack.c.l.b16 %v79
  %v103 = vunpack.c.l.b16 %v80
  %v104 = vunpack.c.l.b16 %v81
  %v105 = vunpack.c.l.b16 %v82
  %v106 = vunpack.c.l.b16 %v83
  %v107 = vunpack.c.l.b16 %v84
  %v108 = vunpack.c.l.b16 %v85
  %v109 = vunpack.c.l.b16 %v86
  %v110 = vpack.c.b16 %v103, %v102
  %v111 = vpack.c.b16 %v105, %v104
  %v112 = vpack.c.b16 %v107, %v106
  %v113 = vpack.c.b16 %v109, %v108
  %vm118 = vcmask 523264
  %v120 = vsel %vm118, %v88, 0
  %122 = vmatprep.subr.bf16.mxu0 0
  %123 = vmatpush1.bf16.msra.mxu0 %v110
  %124 = vmatprep.subr.bf16.mxu0 0
  %125 = vmatpush1.bf16.msra.mxu0 %v111
  %126 = vmatprep.subr.bf16.mxu0 0
  %127 = vmatpush1.bf16.msra.mxu0 %v112
  %128 = vmatprep.subr.bf16.mxu0 0
  %129 = vmatpush1.bf16.msra.mxu0 %v113
  %130 = vmatprep.subr.bf16.mxu0 0
  %131 = vmatpush1.bf16.msra.mxu0 0
  %132 = vmatprep.subr.bf16.mxu0 0
  %133 = vmatpush1.bf16.msra.mxu0 0
  %134 = vmatprep.subr.bf16.mxu0 0
  %135 = vmatpush1.bf16.msra.mxu0 0
  %136 = vmatprep.subr.bf16.mxu0 0
  %137 = vmatpush1.bf16.msra.mxu0 0
  %138 = vmatprep.subr.bf16.mxu0 0
  %139 = vmatpush1.bf16.msra.mxu0 0
  %140 = vmatprep.subr.bf16.mxu0 0
  %141 = vmatpush1.bf16.msra.mxu0 0
  %142 = vmatprep.subr.bf16.mxu0 0
  %143 = vmatpush1.bf16.msra.mxu0 0
  %144 = vmatprep.subr.bf16.mxu0 0
  %145 = vmatpush1.bf16.msra.mxu0 0
  %146 = vmatprep.subr.bf16.mxu0 0
  %147 = vmatpush1.bf16.msra.mxu0 0
  %148 = vmatprep.subr.bf16.mxu0 0
  %149 = vmatpush1.bf16.msra.mxu0 0
  %150 = vmatprep.subr.bf16.mxu0 0
  %151 = vmatpush1.bf16.msra.mxu0 0
  %152 = vmatprep.subr.bf16.mxu0 0
  %153 = vmatpush1.bf16.msra.mxu0 0
  %154 = vmatprep.mubr.bf16.mxu0 0
  %155 = vmatmul.mubr.bf16.gmra.mrb[0].mxu0 %v120
  %v156 = vpop.f32.mrb[0].mxu0
  %v157 = vadd.f32 %v93, %v156
  %v158 = vpop.f32.mrb[0].mxu0
  %v159 = vpop.f32.mrb[0].mxu0
  %v160 = vpop.f32.mrb[0].mxu0
  %161 = vdwg.mxu0
  %v162 = vtanh.pop %v157
  %v163 = vld [vmem:[%s1] sm:$0x3]
  %v164 = vld [vmem:[%s3] sm:$0xf]
  %v165 = vld [vmem:[%s3 + $0x4] sm:$0xf]
  %v166 = vld [vmem:[%s3 + $0x8] sm:$0xf]
  %v167 = vld [vmem:[%s3 + $0xc] sm:$0xf]
  %v168 = vunpack.c.l.bf16 %v164
  %v169 = vunpack.c.l.bf16 %v165
  %v170 = vunpack.c.l.bf16 %v166
  %v171 = vunpack.c.l.bf16 %v167
  %173 = vset.pattern.permute.xlu0 0
  %174 = vperm.xlu0 %173, %v168
  %v175 = vpop.permute.xlu0 %174
  %178 = vset.pattern.permute.xlu0 0
  %179 = vperm.xlu0 %178, %v169
  %v180 = vpop.permute.xlu0 %179
  %183 = vset.pattern.permute.xlu0 0
  %184 = vperm.xlu0 %183, %v170
  %v185 = vpop.permute.xlu0 %184
  %188 = vset.pattern.permute.xlu0 0
  %189 = vperm.xlu0 %188, %v171
  %v190 = vpop.permute.xlu0 %189
  %v192 = vlaneseq
  %v193 = vshrl.u32 %v192, 7
  %v194 = vsub.s32 0, %v193
  %v195 = vrot.slane %v163, %v194
  %v196 = vmul.f32 %v175, %v195
  %v197 = vmul.f32 %v180, %v195
  %v198 = vmul.f32 %v185, %v195
  %v199 = vmul.f32 %v190, %v195
  %200 = vset.pattern.permute.xlu0 2
  %201 = vperm.xlu0 %200, %v168
  %v202 = vpop.permute.xlu0 %201
  %204 = vset.pattern.permute.xlu0 2
  %205 = vperm.xlu0 %204, %v169
  %v206 = vpop.permute.xlu0 %205
  %208 = vset.pattern.permute.xlu0 2
  %209 = vperm.xlu0 %208, %v170
  %v210 = vpop.permute.xlu0 %209
  %212 = vset.pattern.permute.xlu0 2
  %213 = vperm.xlu0 %212, %v171
  %v214 = vpop.permute.xlu0 %213
  %v216 = vadd.f32 %v202, %v196
  %v217 = vadd.f32 %v206, %v197
  %v218 = vadd.f32 %v210, %v198
  %v219 = vadd.f32 %v214, %v199
  %220 = vset.pattern.permute.xlu0 1
  %221 = vperm.xlu0 %220, %v168
  %v222 = vpop.permute.xlu0 %221
  %224 = vset.pattern.permute.xlu0 1
  %225 = vperm.xlu0 %224, %v169
  %v226 = vpop.permute.xlu0 %225
  %228 = vset.pattern.permute.xlu0 1
  %229 = vperm.xlu0 %228, %v170
  %v230 = vpop.permute.xlu0 %229
  %232 = vset.pattern.permute.xlu0 1
  %233 = vperm.xlu0 %232, %v171
  %v234 = vpop.permute.xlu0 %233
  %v236 = vlaneseq
  %v237 = vshrl.u32 %v236, 7
  %v238 = vsub.s32 1, %v237
  %v239 = vrot.slane %v163, %v238
  %v240 = vmul.f32 %v222, %v239
  %v241 = vmul.f32 %v226, %v239
  %v242 = vmul.f32 %v230, %v239
  %v243 = vmul.f32 %v234, %v239
  %v244 = vadd.f32 %v216, %v240
  %v245 = vadd.f32 %v217, %v241
  %v246 = vadd.f32 %v218, %v242
  %v247 = vadd.f32 %v219, %v243
  %v248 = vtanh.pop %v244
  %v249 = vtanh.pop %v245
  %v250 = vtanh.pop %v246
  %v251 = vtanh.pop %v247
  %v252 = vld [vmem:[%s3 + $0x10] sm:$0xf]
  %v253 = vld [vmem:[%s3 + $0x14] sm:$0xf]
  %v254 = vld [vmem:[%s3 + $0x18] sm:$0xf]
  %v255 = vld [vmem:[%s3 + $0x1c] sm:$0xf]
  %v256 = vpack.c.bf16 %v249, %v248
  %v257 = vpack.c.bf16 %v251, %v250
  %v258 = vunpack.c.l.bf16 %v252
  %v259 = vunpack.c.l.bf16 %v253
  %v260 = vunpack.c.l.bf16 %v254
  %v261 = vunpack.c.l.bf16 %v255
  %263 = vset.pattern.permute.xlu0 32
  %264 = vperm.xlu0 %263, %v258
  %v265 = vpop.permute.xlu0 %264
  %268 = vset.pattern.permute.xlu0 32
  %269 = vperm.xlu0 %268, %v259
  %v270 = vpop.permute.xlu0 %269
  %273 = vset.pattern.permute.xlu0 32
  %274 = vperm.xlu0 %273, %v260
  %v275 = vpop.permute.xlu0 %274
  %278 = vset.pattern.permute.xlu0 32
  %279 = vperm.xlu0 %278, %v261
  %v280 = vpop.permute.xlu0 %279
  %v286 = vunpack.c.l.b16 %v252
  %v287 = vunpack.c.l.b16 %v253
  %v288 = vunpack.c.l.b16 %v254
  %v289 = vunpack.c.l.b16 %v255
  %v290 = vpack.c.b16 %v287, %v286
  %v291 = vpack.c.b16 %v289, %v288
  %vm292 = vcmask 261120
  %v294 = vsel %vm292, %v290, 0
  %v297 = vsel %vm292, %v291, 0
  %299 = vmatprep.subr.bf16.mxu0 0
  %300 = vmatpush1.bf16.msra.mxu0 %v256
  %301 = vmatprep.subr.bf16.mxu0 0
  %302 = vmatpush1.bf16.msra.mxu0 %v257
  %303 = vmatprep.subr.bf16.mxu0 0
  %304 = vmatpush1.bf16.msra.mxu0 0
  %305 = vmatprep.subr.bf16.mxu0 0
  %306 = vmatpush1.bf16.msra.mxu0 0
  %307 = vmatprep.subr.bf16.mxu0 0
  %308 = vmatpush1.bf16.msra.mxu0 0
  %309 = vmatprep.subr.bf16.mxu0 0
  %310 = vmatpush1.bf16.msra.mxu0 0
  %311 = vmatprep.subr.bf16.mxu0 0
  %312 = vmatpush1.bf16.msra.mxu0 0
  %313 = vmatprep.subr.bf16.mxu0 0
  %314 = vmatpush1.bf16.msra.mxu0 0
  %315 = vmatprep.subr.bf16.mxu0 0
  %316 = vmatpush1.bf16.msra.mxu0 0
  %317 = vmatprep.subr.bf16.mxu0 0
  %318 = vmatpush1.bf16.msra.mxu0 0
  %319 = vmatprep.subr.bf16.mxu0 0
  %320 = vmatpush1.bf16.msra.mxu0 0
  %321 = vmatprep.subr.bf16.mxu0 0
  %322 = vmatpush1.bf16.msra.mxu0 0
  %323 = vmatprep.subr.bf16.mxu0 0
  %324 = vmatpush1.bf16.msra.mxu0 0
  %325 = vmatprep.subr.bf16.mxu0 0
  %326 = vmatpush1.bf16.msra.mxu0 0
  %327 = vmatprep.subr.bf16.mxu0 0
  %328 = vmatpush1.bf16.msra.mxu0 0
  %329 = vmatprep.subr.bf16.mxu0 0
  %330 = vmatpush1.bf16.msra.mxu0 0
  %331 = vmatprep.mubr.bf16.mxu0 0
  %332 = vmatmul.mubr.bf16.gmra.mrb[0].mxu0 %v294
  %v333 = vpop.f32.mrb[0].mxu0
  %v334 = vadd.f32 %v265, %v333
  %v335 = vpop.f32.mrb[0].mxu0
  %v336 = vpop.f32.mrb[0].mxu0
  %v337 = vadd.f32 %v270, %v336
  %v338 = vpop.f32.mrb[0].mxu0
  %339 = vmatprep.mubr.bf16.mxu0 0
  %340 = vmatmul.mubr.bf16.gmra.mrb[0].mxu0 %v297
  %v341 = vpop.f32.mrb[0].mxu0
  %v342 = vadd.f32 %v275, %v341
  %v343 = vpop.f32.mrb[0].mxu0
  %v344 = vpop.f32.mrb[0].mxu0
  %v345 = vadd.f32 %v280, %v344
  %v346 = vpop.f32.mrb[0].mxu0
  %347 = vdwg.mxu0
  %v348 = vtanh.pop %v334
  %v349 = vtanh.pop %v337
  %v350 = vtanh.pop %v342
  %v351 = vtanh.pop %v345
  %353 = vrot.lane.b32.xlu0 %v162, 96
  %v354 = vpop.permute.xlu0 %353
  %v356 = vmul.f32 %v162, %v354
  %v357 = vpack.c.bf16 %v356, %v356
  %v358 = vpack.c.bf16 %v349, %v348
  %v359 = vpack.c.bf16 %v351, %v350
  %v361 = vsel %vm292, %v357, 0
  %363 = vmatprep.subr.bf16.mxu0 0
  %364 = vmatpush1.bf16.msra.mxu0 %v358
  %365 = vmatprep.subr.bf16.mxu0 0
  %366 = vmatpush1.bf16.msra.mxu0 %v359
  %367 = vmatprep.subr.bf16.mxu0 0
  %368 = vmatpush1.bf16.msra.mxu0 0
  %369 = vmatprep.subr.bf16.mxu0 0
  %370 = vmatpush1.bf16.msra.mxu0 0
  %371 = vmatprep.subr.bf16.mxu0 0
  %372 = vmatpush1.bf16.msra.mxu0 0
  %373 = vmatprep.subr.bf16.mxu0 0
  %374 = vmatpush1.bf16.msra.mxu0 0
  %375 = vmatprep.subr.bf16.mxu0 0
  %376 = vmatpush1.bf16.msra.mxu0 0
  %377 = vmatprep.subr.bf16.mxu0 0
  %378 = vmatpush1.bf16.msra.mxu0 0
  %379 = vmatprep.subr.bf16.mxu0 0
  %380 = vmatpush1.bf16.msra.mxu0 0
  %381 = vmatprep.subr.bf16.mxu0 0
  %382 = vmatpush1.bf16.msra.mxu0 0
  %383 = vmatprep.subr.bf16.mxu0 0
  %384 = vmatpush1.bf16.msra.mxu0 0
  %385 = vmatprep.subr.bf16.mxu0 0
  %386 = vmatpush1.bf16.msra.mxu0 0
  %387 = vmatprep.subr.bf16.mxu0 0
  %388 = vmatpush1.bf16.msra.mxu0 0
  %389 = vmatprep.subr.bf16.mxu0 0
  %390 = vmatpush1.bf16.msra.mxu0 0
  %391 = vmatprep.subr.bf16.mxu0 0
  %392 = vmatpush1.bf16.msra.mxu0 0
  %393 = vmatprep.subr.bf16.mxu0 0
  %394 = vmatpush1.bf16.msra.mxu0 0
  %395 = vmatprep.mubr.bf16.mxu0 0
  %396 = vmatmul.mubr.bf16.gmra.mrb[0].mxu0 %v361
  %v397 = vpop.f32.mrb[0].mxu0
  %v398 = vadd.f32 0.0, %v397
  %v399 = vpop.f32.mrb[0].mxu0
  %v400 = vpop.f32.mrb[0].mxu0
  %v401 = vpop.f32.mrb[0].mxu0
  %402 = vdwg.mxu0
  %403 = vst [vmem:[%s4] sm:$0xff] %v398
  // Predicated region
  $region18: #{opnn_forward.1} parent=0 // pred_check
    _
  $region19: #{opnn_forward.1} parent=0 // pred_check_branch
    %405 = sbr.rel (0) target = $region21
  $region20: #{opnn_forward.1} parent=0 // pred_region
    _
  $region21: #{opnn_forward.1} parent=0 // pred_fallthru
    _
  // Predicated region
  $region22: #{opnn_forward.1} parent=0 // pred_check
    _
  $region23: #{opnn_forward.1} parent=0 // pred_check_branch
    %407 = sbr.rel (0) target = $region25
  $region24: #{opnn_forward.1} parent=0 // pred_region
    _
  $region25: #{opnn_forward.1} parent=0 // pred_fallthru
    _

</llo_original>
